<compile_context>
chip_gen: v5e
topology: v5e:2x2
jax: 0.10.0
libtpu: 0.0.40
codegen_flags: <defaults>
</compile_context>

<pallas_src>
import functools

import jax
import jax.numpy as jnp
from jax import lax
from jax.experimental import pallas as pl
from jax.experimental.pallas import tpu as pltpu

_LANE = 128


def _round_up(v, m):
  return ((v + m - 1) // m) * m


def _pad2d(a, rows, cols):
  return jnp.pad(a, ((0, rows - a.shape[0]), (0, cols - a.shape[1])))


def _pick_tile(n_p, pref):
  """Largest multiple of 128 <= pref that divides n_p (n_p is a multiple of 128)."""
  t = min(pref, n_p)
  while n_p % t:
    t -= _LANE
  return t


def _sage_layer_kernel(a_ref, dinv_ref, xk_ref, xi_ref, wl_ref, wr_ref, b_ref,
                       o_ref, acc_ref, *, activation, num_class):
  """One GraphSAGE mean-aggregation layer for a row block, reducing over K blocks.

  a_ref   : [TM, TK]  bf16  edge-count adjacency block, A[i, j] = #edges j->i
  dinv_ref: [TM, 1]   f32   1 / max(in_degree, 1) row scale (exact post-scale)
  xk_ref  : [TK, Fp]  bf16  node features for the current K (neighbor) block
  xi_ref  : [TM, Fp]  bf16  node features of the row (self) block, for lin_r
  w*_ref  : bf16 weights, pre-transposed [Fp, Op]; b_ref f32 [1, Op]
  o_ref   : [TM, Op]  layer output block (bf16 hidden / f32 log-softmax)
  acc_ref : [TM, Fp]  f32   aggregation accumulator scratch
  """
  k = pl.program_id(1)

  @pl.when(k == 0)
  def _init():
    acc_ref[...] = jnp.zeros_like(acc_ref)

  # agg_i += A[i_block, k_block] @ X[k_block, :]   (bf16 MXU, f32 accumulate)
  acc_ref[...] += jnp.dot(a_ref[...], xk_ref[...],
                          preferred_element_type=jnp.float32)

  @pl.when(k == pl.num_programs(1) - 1)
  def _finalize():
    agg = (acc_ref[...] * dinv_ref[...]).astype(jnp.bfloat16)
    out = (jnp.dot(agg, wl_ref[...], preferred_element_type=jnp.float32)
           + jnp.dot(xi_ref[...], wr_ref[...], preferred_element_type=jnp.float32)
           + b_ref[...])
    if activation == "relu":
      o_ref[...] = jnp.maximum(out, 0.0).astype(o_ref.dtype)
    else:
      # Masked, numerically stable log_softmax over the valid class columns (f32).
      col = lax.broadcasted_iota(jnp.int32, out.shape, 1)
      out = jnp.where(col < num_class, out, -1e30)
      m = jnp.max(out, axis=-1, keepdims=True)
      s = out - m
      lse = jnp.log(jnp.sum(jnp.exp(s), axis=-1, keepdims=True))
      o_ref[...] = (s - lse).astype(o_ref.dtype)


def _sage_layer(a, dinv, x, w_l, w_r, b, *, activation, num_class=0,
                out_dtype=jnp.bfloat16):
  """Row-blocked pallas_call for one SAGE layer: out = act(lin_l(mean_j x_j) + lin_r(x_i))."""
  n_p = a.shape[0]
  f_p = x.shape[1]
  o_p = w_l.shape[1]
  tm = _pick_tile(n_p, 256)   # 256-multiple row tiles fill the v6e/v7x MXU
  tk = _pick_tile(n_p, 512)   # deeper K tile for the N^2 aggregation matmul
  grid = (n_p // tm, n_p // tk)

  # Deterministic VMEM budget: double-buffered blocks + accumulator scratch + headroom.
  vmem_bytes = 2 * (tm * tk * 2 + tm * 4 + tk * f_p * 2 + tm * f_p * 2
                    + 2 * f_p * o_p * 2 + o_p * 4 + tm * o_p * 4) + tm * f_p * 4
  vmem_bytes = min(max(int(vmem_bytes * 3 // 2) + (2 << 20), 16 << 20), 64 << 20)

  flops = 2 * n_p * n_p * f_p + 2 * 2 * n_p * f_p * o_p
  transcendentals = n_p * (o_p + 1) if activation == "log_softmax" else 0
  bytes_accessed = (n_p * n_p * 2 + n_p * 4 + 2 * n_p * f_p * 2
                    + 2 * f_p * o_p * 2 + o_p * 4
                    + n_p * o_p * jnp.dtype(out_dtype).itemsize)

  return pl.pallas_call(
      functools.partial(_sage_layer_kernel, activation=activation,
                        num_class=num_class),
      out_shape=jax.ShapeDtypeStruct((n_p, o_p), out_dtype),
      grid_spec=pltpu.PrefetchScalarGridSpec(
          num_scalar_prefetch=0,
          grid=grid,
          in_specs=[
              pl.BlockSpec((tm, tk), lambda i, k: (i, k)),    # A row/K block
              pl.BlockSpec((tm, 1), lambda i, k: (i, 0)),     # 1/deg (row block)
              pl.BlockSpec((tk, f_p), lambda i, k: (k, 0)),   # X neighbor (K) block
              pl.BlockSpec((tm, f_p), lambda i, k: (i, 0)),   # X self (row) block
              pl.BlockSpec((f_p, o_p), lambda i, k: (0, 0)),  # W_l^T
              pl.BlockSpec((f_p, o_p), lambda i, k: (0, 0)),  # W_r^T
              pl.BlockSpec((1, o_p), lambda i, k: (0, 0)),    # bias
          ],
          out_specs=pl.BlockSpec((tm, o_p), lambda i, k: (i, 0)),
          scratch_shapes=[pltpu.VMEM((tm, f_p), jnp.float32)],
      ),
      compiler_params=pltpu.CompilerParams(
          dimension_semantics=("parallel", "arbitrary"),
          vmem_limit_bytes=vmem_bytes),
      cost_estimate=pl.CostEstimate(flops=flops,
                                    transcendentals=transcendentals,
                                    bytes_accessed=bytes_accessed),
  )(a, dinv, x, x, w_l, w_r, b)


def sagenet_forward(params, x, edge_index, edge_attr, num_layers=2):
  # edge_attr.squeeze(1) is computed by the torch forward but never consumed by
  # the SAGEConv calls on this path (use_edge_weight has no effect).
  _ = edge_attr[:, 0]

  n, f_in = x.shape
  hidden = params["conv0"]["w_l_t"].shape[1]
  num_class = params["conv2"]["w_l_t"].shape[1]

  # Lane-dense padding: N (lane axis of A and MXU contraction dim) and all
  # feature / hidden / class axes padded to multiples of 128.
  n_p = _round_up(n, _LANE)
  f0_p = _round_up(f_in, _LANE)
  h_p = _round_up(hidden, _LANE)
  c_p = _round_up(num_class, _LANE)

  # Dense edge-count adjacency built directly in bf16 (O(E) scatter; counts are
  # exact up to 256 parallel edges) and an O(E) degree segment-sum over dst.
  # The mean is applied as an exact f32 1/deg post-scale inside the kernel.
  # NOTE: for repeated forwards on a static graph, cache a_bf16 / dinv.
  # TODO(synk): on v7x an fp8(e4m3) adjacency would halve A's VMEM/DMA again.
  src, dst = edge_index[0], edge_index[1]
  a_bf16 = jnp.zeros((n_p, n_p), jnp.bfloat16).at[dst, src].add(
      jnp.ones(src.shape, jnp.bfloat16))
  deg = jnp.zeros((n_p,), jnp.float32).at[dst].add(1.0)
  dinv = (1.0 / jnp.maximum(deg, 1.0)).reshape(n_p, 1)

  # x is only ever a bf16 MXU operand: pad + cast once in the wrapper.
  h = _pad2d(x, n_p, f0_p).astype(jnp.bfloat16)

  # Hidden layers: conv0 first, conv1 for any further hidden layers (mirrors the
  # torch loop); dropout is identity at inference.  h stays bf16 in HBM.
  for i in range(num_layers - 1):
    conv = params["conv0"] if i == 0 else params["conv1"]
    f_p = f0_p if i == 0 else h_p
    w_l = _pad2d(conv["w_l_t"], f_p, h_p).astype(jnp.bfloat16)
    w_r = _pad2d(conv["w_r_t"], f_p, h_p).astype(jnp.bfloat16)
    b = _pad2d(conv["b"], 1, h_p)
    h = _sage_layer(a_bf16, dinv, h, w_l, w_r, b,
                    activation="relu", out_dtype=jnp.bfloat16)

  c2 = params["conv2"]
  w_l2 = _pad2d(c2["w_l_t"], h_p, c_p).astype(jnp.bfloat16)
  w_r2 = _pad2d(c2["w_r_t"], h_p, c_p).astype(jnp.bfloat16)
  b2 = _pad2d(c2["b"], 1, c_p)
  out = _sage_layer(a_bf16, dinv, h, w_l2, w_r2, b2,
                    activation="log_softmax", num_class=num_class,
                    out_dtype=jnp.float32)
  return out[:n, :num_class]


def _sagenet_reference(params, x, edge_index, num_layers=2):
  """Pure-JAX f32 reference of the same forward (for tolerance check)."""
  n = x.shape[0]
  src, dst = edge_index[0], edge_index[1]
  a = jnp.zeros((n, n), jnp.float32).at[dst, src].add(1.0)
  a_mean = a / jnp.maximum(jnp.sum(a, axis=1, keepdims=True), 1.0)

  def layer(p, h):
    return (a_mean @ h) @ p["w_l_t"] + h @ p["w_r_t"] + p["b"]

  h = x
  for i in range(num_layers - 1):
    h = jax.nn.relu(layer(params["conv0"] if i == 0 else params["conv1"], h))
  out = layer(params["conv2"], h)
  return jax.nn.log_softmax(out, axis=1)


def init_linear(key, fan_in, fan_out, bias=True):
  """Deterministic glorot-style init; returns W^T [fan_in, fan_out] (+ bias [1, fan_out])."""
  k_w, _ = jax.random.split(key)
  limit = jnp.sqrt(6.0 / (fan_in + fan_out))
  w_t = jax.random.uniform(k_w, (fan_in, fan_out), jnp.float32, -limit, limit)
  if bias:
    b = jnp.zeros((1, fan_out), jnp.float32)
    return w_t, b
  return w_t


def init_sage_conv(key, f_in, f_out):
  k_l, k_r = jax.random.split(key)
  w_l_t, b_l = init_linear(k_l, f_in, f_out, bias=True)   # lin_l (bias=True in PyG)
  w_r_t = init_linear(k_r, f_in, f_out, bias=False)        # lin_r (bias=False in PyG)
  return dict(w_l_t=w_l_t, w_r_t=w_r_t, b=b_l)


if __name__ == "__main__":
  NUM_NODES = 16
  NUM_FEATURE = 8
  HIDDEN = 64
  NUM_CLASS = 4
  NUM_EDGES = 48

  key = jax.random.PRNGKey(0)
  k_x, k_e, k_w, k_p0, k_p1, k_p2 = jax.random.split(key, 6)

  # deterministic synthetic graph data
  x = jax.random.normal(k_x, (NUM_NODES, NUM_FEATURE), jnp.float32)
  edge_index = jax.random.randint(k_e, (2, NUM_EDGES), 0, NUM_NODES, jnp.int32)
  edge_attr = jax.random.uniform(k_w, (NUM_EDGES, 1), jnp.float32)

  # deterministic parameters (mirrors __init__: conv0, conv1, conv2)
  params = {
      "conv0": init_sage_conv(k_p0, NUM_FEATURE, HIDDEN),
      "conv1": init_sage_conv(k_p1, HIDDEN, HIDDEN),   # unused when num_layers=2
      "conv2": init_sage_conv(k_p2, HIDDEN, NUM_CLASS),
  }

  out = sagenet_forward(params, x, edge_index, edge_attr, num_layers=2)
  out = jax.block_until_ready(out)

  assert out.shape == (NUM_NODES, NUM_CLASS)
  # log_softmax rows must sum (in prob space) to 1
  assert bool(jnp.allclose(jnp.sum(jnp.exp(out), axis=1), 1.0, atol=1e-4))
  # bf16-tolerant check against a pure-JAX f32 reference
  ref = _sagenet_reference(params, x, edge_index, num_layers=2)
  assert bool(jnp.allclose(out, ref, atol=5e-2, rtol=5e-2))
  print("KERNEL_OK")
</pallas_src>

<mosaic_0001>
module attributes {stable_mosaic.version = 11 : i64} {
  func.func @_sage_layer_kernel(%arg0: i32, %arg1: i32, %arg2: memref<128x128xbf16, #tpu.memory_space<vmem>>, %arg3: memref<128x1xf32, #tpu.memory_space<vmem>>, %arg4: memref<128x128xbf16, #tpu.memory_space<vmem>>, %arg5: memref<128x128xbf16, #tpu.memory_space<vmem>>, %arg6: memref<128x128xbf16, #tpu.memory_space<vmem>>, %arg7: memref<128x128xbf16, #tpu.memory_space<vmem>>, %arg8: memref<1x128xf32, #tpu.memory_space<vmem>>, %arg9: memref<128x128xbf16, #tpu.memory_space<vmem>>, %arg10: memref<128x128xf32, #tpu.memory_space<vmem>>) attributes {dimension_semantics = [#tpu.dimension_semantics<parallel>, #tpu.dimension_semantics<arbitrary>], iteration_bounds = array<i64: 1, 1>, scalar_prefetch = 0 : i64, scratch_operands = 1 : i64, tpu.core_type = #tpu.core_type<tc>, window_params = [{transform_indices = @transform_0, window_bounds = array<i64: 128, 128>}, {transform_indices = @transform_1, window_bounds = array<i64: 128, 1>}, {transform_indices = @transform_2, window_bounds = array<i64: 128, 128>}, {transform_indices = @transform_3, window_bounds = array<i64: 128, 128>}, {pipeline_mode = #tpu.pipeline_mode<synchronous>, transform_indices = @transform_4, window_bounds = array<i64: 128, 128>}, {pipeline_mode = #tpu.pipeline_mode<synchronous>, transform_indices = @transform_5, window_bounds = array<i64: 128, 128>}, {pipeline_mode = #tpu.pipeline_mode<synchronous>, transform_indices = @transform_6, window_bounds = array<i64: 1, 128>}, {transform_indices = @transform_7, window_bounds = array<i64: 128, 128>}]} {
    %c0_i32 = arith.constant 0 : i32
    %0 = arith.cmpi eq, %arg1, %c0_i32 : i32
    %1 = arith.extui %0 : i1 to i32
    %c0_i32_0 = arith.constant 0 : i32
    %2 = arith.cmpi ne, %1, %c0_i32_0 : i32
    scf.if %2 {
      %cst_10 = arith.constant 0.000000e+00 : f32
      %12 = vector.broadcast %cst_10 : f32 to vector<128x128xf32>
      %c0_11 = arith.constant 0 : index
      %c0_12 = arith.constant 0 : index
      %13 = vector.load %arg10[%c0_11, %c0_12] : memref<128x128xf32, #tpu.memory_space<vmem>>, vector<128x128xf32>
      tpu.vector_store %arg10[%c0_11, %c0_12], %12 {strides = array<i32>} : memref<128x128xf32, #tpu.memory_space<vmem>>, vector<128x128xf32>,
    } else {
    }
    %c0 = arith.constant 0 : index
    %c0_1 = arith.constant 0 : index
    %3 = vector.load %arg10[%c0, %c0_1] : memref<128x128xf32, #tpu.memory_space<vmem>>, vector<128x128xf32>
    %c0_2 = arith.constant 0 : index
    %c0_3 = arith.constant 0 : index
    %4 = vector.load %arg2[%c0_2, %c0_3] : memref<128x128xbf16, #tpu.memory_space<vmem>>, vector<128x128xbf16>
    %c0_4 = arith.constant 0 : index
    %c0_5 = arith.constant 0 : index
    %5 = vector.load %arg4[%c0_4, %c0_5] : memref<128x128xbf16, #tpu.memory_space<vmem>>, vector<128x128xbf16>
    %cst = arith.constant dense<0.000000e+00> : vector<128x128xf32>
    %6 = tpu.matmul %4, %5, %cst {dimension_numbers = #tpu.dot_dimension_numbers<[1], [0], [0], [1], [0, 0, 1, 1], [], []>} : vector<128x128xbf16>, vector<128x128xbf16>, vector<128x128xf32> -> vector<128x128xf32>
    %7 = arith.addf %3, %6 : vector<128x128xf32>
    %c0_6 = arith.constant 0 : index
    %c0_7 = arith.constant 0 : index
    %8 = vector.load %arg10[%c0_6, %c0_7] : memref<128x128xf32, #tpu.memory_space<vmem>>, vector<128x128xf32>
    tpu.vector_store %arg10[%c0_6, %c0_7], %7 {strides = array<i32>} : memref<128x128xf32, #tpu.memory_space<vmem>>, vector<128x128xf32>,
    %c0_i32_8 = arith.constant 0 : i32
    %9 = arith.cmpi eq, %arg1, %c0_i32_8 : i32
    %10 = arith.extui %9 : i1 to i32
    %c0_i32_9 = arith.constant 0 : i32
    %11 = arith.cmpi ne, %10, %c0_i32_9 : i32
    scf.if %11 {
      %c0_10 = arith.constant 0 : index
      %c0_11 = arith.constant 0 : index
      %12 = vector.load %arg10[%c0_10, %c0_11] : memref<128x128xf32, #tpu.memory_space<vmem>>, vector<128x128xf32>
      %c0_12 = arith.constant 0 : index
      %c0_13 = arith.constant 0 : index
      %13 = vector.load %arg3[%c0_12, %c0_13] : memref<128x1xf32, #tpu.memory_space<vmem>>, vector<128x1xf32>
      %14 = vector.broadcast %13 : vector<128x1xf32> to vector<128x128xf32>
      %15 = arith.mulf %12, %14 : vector<128x128xf32>
      %16 = arith.truncf %15 : vector<128x128xf32> to vector<128x128xbf16>
      %c0_14 = arith.constant 0 : index
      %c0_15 = arith.constant 0 : index
      %17 = vector.load %arg6[%c0_14, %c0_15] : memref<128x128xbf16, #tpu.memory_space<vmem>>, vector<128x128xbf16>
      %cst_16 = arith.constant dense<0.000000e+00> : vector<128x128xf32>
      %18 = tpu.matmul %16, %17, %cst_16 {dimension_numbers = #tpu.dot_dimension_numbers<[1], [0], [0], [1], [0, 0, 1, 1], [], []>} : vector<128x128xbf16>, vector<128x128xbf16>, vector<128x128xf32> -> vector<128x128xf32>
      %c0_17 = arith.constant 0 : index
      %c0_18 = arith.constant 0 : index
      %19 = vector.load %arg5[%c0_17, %c0_18] : memref<128x128xbf16, #tpu.memory_space<vmem>>, vector<128x128xbf16>
      %c0_19 = arith.constant 0 : index
      %c0_20 = arith.constant 0 : index
      %20 = vector.load %arg7[%c0_19, %c0_20] : memref<128x128xbf16, #tpu.memory_space<vmem>>, vector<128x128xbf16>
      %cst_21 = arith.constant dense<0.000000e+00> : vector<128x128xf32>
      %21 = tpu.matmul %19, %20, %cst_21 {dimension_numbers = #tpu.dot_dimension_numbers<[1], [0], [0], [1], [0, 0, 1, 1], [], []>} : vector<128x128xbf16>, vector<128x128xbf16>, vector<128x128xf32> -> vector<128x128xf32>
      %22 = arith.addf %18, %21 : vector<128x128xf32>
      %c0_22 = arith.constant 0 : index
      %c0_23 = arith.constant 0 : index
      %23 = vector.load %arg8[%c0_22, %c0_23] : memref<1x128xf32, #tpu.memory_space<vmem>>, vector<1x128xf32>
      %24 = vector.broadcast %23 : vector<1x128xf32> to vector<128x128xf32>
      %25 = arith.addf %22, %24 : vector<128x128xf32>
      %cst_24 = arith.constant 0.000000e+00 : f32
      %26 = vector.broadcast %cst_24 : f32 to vector<128x128xf32>
      %27 = arith.maximumf %25, %26 : vector<128x128xf32>
      %28 = arith.truncf %27 : vector<128x128xf32> to vector<128x128xbf16>
      %c0_25 = arith.constant 0 : index
      %c0_26 = arith.constant 0 : index
      %29 = vector.load %arg9[%c0_25, %c0_26] : memref<128x128xbf16, #tpu.memory_space<vmem>>, vector<128x128xbf16>
      tpu.vector_store %arg9[%c0_25, %c0_26], %28 {strides = array<i32>} : memref<128x128xbf16, #tpu.memory_space<vmem>>, vector<128x128xbf16>,
    } else {
    }
    return
  }
  func.func @transform_0(%arg0: i32, %arg1: i32) -> (i32, i32) {
    %c0_i32 = arith.constant 0 : i32
    return %arg0, %arg1 : i32, i32
  }
  func.func @transform_1(%arg0: i32, %arg1: i32) -> (i32, i32) {
    %c0_i32 = arith.constant 0 : i32
    %c0_i32_0 = arith.constant 0 : i32
    return %arg0, %c0_i32 : i32, i32
  }
  func.func @transform_2(%arg0: i32, %arg1: i32) -> (i32, i32) {
    %c0_i32 = arith.constant 0 : i32
    %c0_i32_0 = arith.constant 0 : i32
    return %arg1, %c0_i32 : i32, i32
  }
  func.func @transform_3(%arg0: i32, %arg1: i32) -> (i32, i32) {
    %c0_i32 = arith.constant 0 : i32
    %c0_i32_0 = arith.constant 0 : i32
    return %arg0, %c0_i32 : i32, i32
  }
  func.func @transform_4(%arg0: i32, %arg1: i32) -> (i32, i32) {
    %c0_i32 = arith.constant 0 : i32
    %c0_i32_0 = arith.constant 0 : i32
    %c0_i32_1 = arith.constant 0 : i32
    return %c0_i32, %c0_i32_0 : i32, i32
  }
  func.func @transform_5(%arg0: i32, %arg1: i32) -> (i32, i32) {
    %c0_i32 = arith.constant 0 : i32
    %c0_i32_0 = arith.constant 0 : i32
    %c0_i32_1 = arith.constant 0 : i32
    return %c0_i32, %c0_i32_0 : i32, i32
  }
  func.func @transform_6(%arg0: i32, %arg1: i32) -> (i32, i32) {
    %c0_i32 = arith.constant 0 : i32
    %c0_i32_0 = arith.constant 0 : i32
    %c0_i32_1 = arith.constant 0 : i32
    return %c0_i32, %c0_i32_0 : i32, i32
  }
  func.func @transform_7(%arg0: i32, %arg1: i32) -> (i32, i32) {
    %c0_i32 = arith.constant 0 : i32
    %c0_i32_0 = arith.constant 0 : i32
    return %arg0, %c0_i32 : i32, i32
  }
}

</mosaic_0001>

<llo_original>
// kernel: tpu_custom_call.1
$region0: #{tpu_custom_call.1}
  #allocation0 [shape = 'u32[]', space=smem, size = 0x4, offset = 0x4, fixed_abs, tag = 'smem constant byte address 0x4 - core index']
  #allocation1 [shape = 'u32[72,128]{1,0:T(1,128)}', space=vmem, size = 0x9000, scoped, tag = 'internal scratch']
  #allocation2 [shape = 'f32[128,128]{1,0:T(8,128)}', space=vmem, size = 0x10000, scoped, tag = 'scratch operand']
  %s0 = inlined_call_operand.vmem [shape: bf16[128,128], index: 0, kind: input, shape index: {}]
  %s1 = inlined_call_operand.vmem [shape: f32[128,1], index: 1, kind: input, shape index: {}]
  %s2 = inlined_call_operand.vmem [shape: bf16[128,128], index: 2, kind: input, shape index: {}]
  %s3 = inlined_call_operand.hbm [shape: bf16[128,128], index: 3, kind: input, shape index: {}]
  %s4 = inlined_call_operand.hbm [shape: bf16[128,128], index: 4, kind: input, shape index: {}]
  %s5 = inlined_call_operand.hbm [shape: bf16[128,128], index: 5, kind: input, shape index: {}]
  %s6 = inlined_call_operand.vmem [shape: f32[1,128], index: 6, kind: input, shape index: {}]
  %s7 = inlined_call_operand.hbm [shape: bf16[128,128], index: 7, kind: output, shape index: {}]
  %s8 = sld [smem:[#allocation0]]
  $region58: #{tpu_custom_call.1} parent=0
    _
  %s10 = ssub.s32 1, %s8
  %s11 = scalar_select 0, %s10, %s8
  $region1: #{tpu_custom_call.1} parent=0
    #allocation3 [shape = 'u8[32768]{0}', space=vmem, size = 0x8000, scoped, tag = 'input window, operand 3, single buffered']
    #allocation4 [shape = 's32[1]{0}', space=sflag, size = 0x4, scoped, tag = 'scoped memory for tpu_custom_call.1']
    #allocation5 [shape = 's32[1]{0}', space=sflag, size = 0x4, scoped, tag = 'scoped memory for tpu_custom_call.1']
    #allocation6 [shape = 'u8[32768]{0}', space=vmem, size = 0x8000, scoped, tag = 'input window, operand 4, single buffered']
    #allocation7 [shape = 's32[1]{0}', space=sflag, size = 0x4, scoped, tag = 'scoped memory for tpu_custom_call.1']
    #allocation8 [shape = 'u8[32768]{0}', space=vmem, size = 0x8000, scoped, tag = 'input window, operand 5, single buffered']
    #allocation9 [shape = 'u8[32768]{0}', space=vmem, size = 0x8000, scoped, tag = 'output window, operand 0, single buffered']
    %12 = vsyncpa [#allocation4], 0
    %13 = vsyncpa [#allocation7], 0
    %14 = vsyncpa [#allocation5], 0
    // Predicated region
    $region2: #{tpu_custom_call.1} parent=1 // pred_check
      _
    $region3: #{tpu_custom_call.1} parent=1 // pred_check_branch
      %16 = sbr.rel (0) target = $region5
    $region4: #{tpu_custom_call.1} parent=1 // pred_region
      _
    $region5: #{tpu_custom_call.1} parent=1 // pred_fallthru
      _
    // Predicated region
    $region6: #{tpu_custom_call.1} parent=1 // pred_check
      _
    $region7: #{tpu_custom_call.1} parent=1 // pred_check_branch
      %18 = sbr.rel (0) target = $region9
    $region8: #{tpu_custom_call.1} parent=1 // pred_region
      _
    $region9: #{tpu_custom_call.1} parent=1 // pred_fallthru
      _
    // Predicated region
    $region10: #{tpu_custom_call.1} parent=1 // pred_check
      _
    $region11: #{tpu_custom_call.1} parent=1 // pred_check_branch
      %20 = sbr.rel (0) target = $region13
    $region12: #{tpu_custom_call.1} parent=1 // pred_region
      _
    $region13: #{tpu_custom_call.1} parent=1 // pred_fallthru
      _
    // Predicated region
    $region14: #{tpu_custom_call.1} parent=1 // pred_check
      _
    $region15: #{tpu_custom_call.1} parent=1 // pred_check_branch
      %22 = sbr.rel (0) target = $region17
    $region16: #{tpu_custom_call.1} parent=1 // pred_region
      %24 = vsyncadd [#allocation4], 0
      %s25 = sshll.u32 %s3, 4
      %s26 = int_to_ptr.hbm [resolvable:$true] %s25
      %s27 = sshll.u32 [#allocation3], 4
      %s28 = int_to_ptr.vmem [resolvable:$true] %s27
      %33 = dma.hbm_to_vmem [thread:$0]  %s26, 1024, %s28, [#allocation4], 64, 64, 4
    $region17: #{tpu_custom_call.1} parent=1 // pred_fallthru
      _
    // Predicated region
    $region18: #{tpu_custom_call.1} parent=1 // pred_check
      _
    $region19: #{tpu_custom_call.1} parent=1 // pred_check_branch
      %35 = sbr.rel (0) target = $region21
    $region20: #{tpu_custom_call.1} parent=1 // pred_region
      %37 = vsyncadd [#allocation7], 0
      %s38 = sshll.u32 %s4, 4
      %s39 = int_to_ptr.hbm [resolvable:$true] %s38
      %s40 = sshll.u32 [#allocation6], 4
      %s41 = int_to_ptr.vmem [resolvable:$true] %s40
      %46 = dma.hbm_to_vmem [thread:$0]  %s39, 1024, %s41, [#allocation7], 64, 64, 4
    $region21: #{tpu_custom_call.1} parent=1 // pred_fallthru
      _
    // Predicated region
    $region22: #{tpu_custom_call.1} parent=1 // pred_check
      _
    $region23: #{tpu_custom_call.1} parent=1 // pred_check_branch
      %48 = sbr.rel (0) target = $region25
    $region24: #{tpu_custom_call.1} parent=1 // pred_region
      %50 = vsyncadd [#allocation7], 0
      %s51 = sshll.u32 %s5, 4
      %s52 = int_to_ptr.hbm [resolvable:$true] %s51
      %s53 = sshll.u32 [#allocation8], 4
      %s54 = int_to_ptr.vmem [resolvable:$true] %s53
      %59 = dma.hbm_to_vmem [thread:$0]  %s52, 1024, %s54, [#allocation7], 64, 64, 4
    $region25: #{tpu_custom_call.1} parent=1 // pred_fallthru
      _
    // Predicated region
    $region26: #{tpu_custom_call.1} parent=1 // pred_check
      _
    $region27: #{tpu_custom_call.1} parent=1 // pred_check_branch
      %61 = sbr.rel (0) target = $region29
    $region28: #{tpu_custom_call.1} parent=1 // pred_region
      _
    $region29: #{tpu_custom_call.1} parent=1 // pred_fallthru
      _
    // Predicated region
    $region30: #{tpu_custom_call.1} parent=1 // pred_check
      _
    $region31: #{tpu_custom_call.1} parent=1 // pred_check_branch
      %63 = sbr.rel (0) target = $region33
    $region32: #{tpu_custom_call.1} parent=1 // pred_region
      %65 = dma.done [#allocation4], 1024
    $region33: #{tpu_custom_call.1} parent=1 // pred_fallthru
      _
    // Predicated region
    $region34: #{tpu_custom_call.1} parent=1 // pred_check
      _
    $region35: #{tpu_custom_call.1} parent=1 // pred_check_branch
      %67 = sbr.rel (0) target = $region37
    $region36: #{tpu_custom_call.1} parent=1 // pred_region
      %69 = dma.done [#allocation7], 1024
    $region37: #{tpu_custom_call.1} parent=1 // pred_fallthru
      _
    // Predicated region
    $region38: #{tpu_custom_call.1} parent=1 // pred_check
      _
    $region39: #{tpu_custom_call.1} parent=1 // pred_check_branch
      %71 = sbr.rel (0) target = $region41
    $region40: #{tpu_custom_call.1} parent=1 // pred_region
      %73 = dma.done [#allocation7], 1024
    $region41: #{tpu_custom_call.1} parent=1 // pred_fallthru
      _
    %p74 = scmp.eq.s32.totalorder 0, 0
    // Predicated region
    $region42: #{tpu_custom_call.1} parent=1 // pred_check
      %p75 = pneg %p74
    $region43: #{tpu_custom_call.1} parent=1 // pred_check_branch
      %77 = sbr.rel (%p75) target = $region45
    $region44: #{tpu_custom_call.1} parent=1 // pred_region
      %78 = vst [vmem:[#allocation2] sm:$0xff] 0.0
      %79 = vst [vmem:[#allocation2 + $0x8] sm:$0xff] 0.0
      %80 = vst [vmem:[#allocation2 + $0x10] sm:$0xff] 0.0
      %81 = vst [vmem:[#allocation2 + $0x18] sm:$0xff] 0.0
      %82 = vst [vmem:[#allocation2 + $0x20] sm:$0xff] 0.0
      %83 = vst [vmem:[#allocation2 + $0x28] sm:$0xff] 0.0
      %84 = vst [vmem:[#allocation2 + $0x30] sm:$0xff] 0.0
      %85 = vst [vmem:[#allocation2 + $0x38] sm:$0xff] 0.0
      %86 = vst [vmem:[#allocation2 + $0x40] sm:$0xff] 0.0
      %87 = vst [vmem:[#allocation2 + $0x48] sm:$0xff] 0.0
      %88 = vst [vmem:[#allocation2 + $0x50] sm:$0xff] 0.0
      %89 = vst [vmem:[#allocation2 + $0x58] sm:$0xff] 0.0
      %90 = vst [vmem:[#allocation2 + $0x60] sm:$0xff] 0.0
      %91 = vst [vmem:[#allocation2 + $0x68] sm:$0xff] 0.0
      %92 = vst [vmem:[#allocation2 + $0x70] sm:$0xff] 0.0
      %93 = vst [vmem:[#allocation2 + $0x78] sm:$0xff] 0.0
    $region45: #{tpu_custom_call.1} parent=1 // pred_fallthru
      _
    %v94 = vld [vmem:[#allocation2] sm:$0xff]
    %v95 = vld [vmem:[#allocation2 + $0x8] sm:$0xff]
    %v96 = vld [vmem:[#allocation2 + $0x10] sm:$0xff]
    %v97 = vld [vmem:[#allocation2 + $0x18] sm:$0xff]
    %v98 = vld [vmem:[#allocation2 + $0x20] sm:$0xff]
    %v99 = vld [vmem:[#allocation2 + $0x28] sm:$0xff]
    %v100 = vld [vmem:[#allocation2 + $0x30] sm:$0xff]
    %v101 = vld [vmem:[#allocation2 + $0x38] sm:$0xff]
    %v102 = vld [vmem:[#allocation2 + $0x40] sm:$0xff]
    %v103 = vld [vmem:[#allocation2 + $0x48] sm:$0xff]
    %v104 = vld [vmem:[#allocation2 + $0x50] sm:$0xff]
    %v105 = vld [vmem:[#allocation2 + $0x58] sm:$0xff]
    %v106 = vld [vmem:[#allocation2 + $0x60] sm:$0xff]
    %v107 = vld [vmem:[#allocation2 + $0x68] sm:$0xff]
    %v108 = vld [vmem:[#allocation2 + $0x70] sm:$0xff]
    %v109 = vld [vmem:[#allocation2 + $0x78] sm:$0xff]
    %v110 = vld [vmem:[%s0] sm:$0xf]
    %v111 = vld [vmem:[%s0 + $0x4] sm:$0xf]
    %v112 = vld [vmem:[%s0 + $0x8] sm:$0xf]
    %v113 = vld [vmem:[%s0 + $0xc] sm:$0xf]
    %v114 = vld [vmem:[%s0 + $0x10] sm:$0xf]
    %v115 = vld [vmem:[%s0 + $0x14] sm:$0xf]
    %v116 = vld [vmem:[%s0 + $0x18] sm:$0xf]
    %v117 = vld [vmem:[%s0 + $0x1c] sm:$0xf]
    %v118 = vld [vmem:[%s0 + $0x20] sm:$0xf]
    %v119 = vld [vmem:[%s0 + $0x24] sm:$0xf]
    %v120 = vld [vmem:[%s0 + $0x28] sm:$0xf]
    %v121 = vld [vmem:[%s0 + $0x2c] sm:$0xf]
    %v122 = vld [vmem:[%s0 + $0x30] sm:$0xf]
    %v123 = vld [vmem:[%s0 + $0x34] sm:$0xf]
    %v124 = vld [vmem:[%s0 + $0x38] sm:$0xf]
    %v125 = vld [vmem:[%s0 + $0x3c] sm:$0xf]
    %v126 = vld [vmem:[%s2] sm:$0xf]
    %v127 = vld [vmem:[%s2 + $0x4] sm:$0xf]
    %v128 = vld [vmem:[%s2 + $0x8] sm:$0xf]
    %v129 = vld [vmem:[%s2 + $0xc] sm:$0xf]
    %v130 = vld [vmem:[%s2 + $0x10] sm:$0xf]
    %v131 = vld [vmem:[%s2 + $0x14] sm:$0xf]
    %v132 = vld [vmem:[%s2 + $0x18] sm:$0xf]
    %v133 = vld [vmem:[%s2 + $0x1c] sm:$0xf]
    %v134 = vld [vmem:[%s2 + $0x20] sm:$0xf]
    %v135 = vld [vmem:[%s2 + $0x24] sm:$0xf]
    %v136 = vld [vmem:[%s2 + $0x28] sm:$0xf]
    %v137 = vld [vmem:[%s2 + $0x2c] sm:$0xf]
    %v138 = vld [vmem:[%s2 + $0x30] sm:$0xf]
    %v139 = vld [vmem:[%s2 + $0x34] sm:$0xf]
    %v140 = vld [vmem:[%s2 + $0x38] sm:$0xf]
    %v141 = vld [vmem:[%s2 + $0x3c] sm:$0xf]
    %v158 = vunpack.c.l.b16 %v110
    %v159 = vunpack.c.l.b16 %v111
    %v160 = vunpack.c.l.b16 %v112
    %v161 = vunpack.c.l.b16 %v113
    %v162 = vunpack.c.l.b16 %v114
    %v163 = vunpack.c.l.b16 %v115
    %v164 = vunpack.c.l.b16 %v116
    %v165 = vunpack.c.l.b16 %v117
    %v166 = vunpack.c.l.b16 %v118
    %v167 = vunpack.c.l.b16 %v119
    %v168 = vunpack.c.l.b16 %v120
    %v169 = vunpack.c.l.b16 %v121
    %v170 = vunpack.c.l.b16 %v122
    %v171 = vunpack.c.l.b16 %v123
    %v172 = vunpack.c.l.b16 %v124
    %v173 = vunpack.c.l.b16 %v125
    %v174 = vpack.c.b16 %v159, %v158
    %v175 = vpack.c.b16 %v161, %v160
    %v176 = vpack.c.b16 %v163, %v162
    %v177 = vpack.c.b16 %v165, %v164
    %v178 = vpack.c.b16 %v167, %v166
    %v179 = vpack.c.b16 %v169, %v168
    %v180 = vpack.c.b16 %v171, %v170
    %v181 = vpack.c.b16 %v173, %v172
    %v206 = vunpack.c.l.b16 %v126
    %v207 = vunpack.c.l.b16 %v127
    %v208 = vunpack.c.l.b16 %v128
    %v209 = vunpack.c.l.b16 %v129
    %v210 = vunpack.c.l.b16 %v130
    %v211 = vunpack.c.l.b16 %v131
    %v212 = vunpack.c.l.b16 %v132
    %v213 = vunpack.c.l.b16 %v133
    %v214 = vunpack.c.l.b16 %v134
    %v215 = vunpack.c.l.b16 %v135
    %v216 = vunpack.c.l.b16 %v136
    %v217 = vunpack.c.l.b16 %v137
    %v218 = vunpack.c.l.b16 %v138
    %v219 = vunpack.c.l.b16 %v139
    %v220 = vunpack.c.l.b16 %v140
    %v221 = vunpack.c.l.b16 %v141
    %v222 = vpack.c.b16 %v207, %v206
    %v223 = vpack.c.b16 %v209, %v208
    %v224 = vpack.c.b16 %v211, %v210
    %v225 = vpack.c.b16 %v213, %v212
    %v226 = vpack.c.b16 %v215, %v214
    %v227 = vpack.c.b16 %v217, %v216
    %v228 = vpack.c.b16 %v219, %v218
    %v229 = vpack.c.b16 %v221, %v220
    %238 = vmatpush.bf16.msra.mxu0 %v229
    %239 = vmatpush.bf16.msra.mxu0 %v228
    %240 = vmatpush.bf16.msra.mxu0 %v227
    %241 = vmatpush.bf16.msra.mxu0 %v226
    %242 = vmatpush.bf16.msra.mxu0 %v225
    %243 = vmatpush.bf16.msra.mxu0 %v224
    %244 = vmatpush.bf16.msra.mxu0 %v223
    %245 = vmatpush.bf16.msra.mxu0 %v222
    %246 = vmatmul.bf16.gmra.mxu0 %v174
    %v247 = vpop.f32.mrf.mxu0
    %v248 = vadd.f32 0.0, %v247
    %v249 = vpop.f32.mrf.mxu0
    %v250 = vadd.f32 0.0, %v249
    %251 = vmatmul.bf16.gmra.mxu0 %v175
    %v252 = vpop.f32.mrf.mxu0
    %v253 = vadd.f32 0.0, %v252
    %v254 = vpop.f32.mrf.mxu0
    %v255 = vadd.f32 0.0, %v254
    %256 = vmatmul.bf16.gmra.mxu0 %v176
    %v257 = vpop.f32.mrf.mxu0
    %v258 = vadd.f32 0.0, %v257
    %v259 = vpop.f32.mrf.mxu0
    %v260 = vadd.f32 0.0, %v259
    %261 = vmatmul.bf16.gmra.mxu0 %v177
    %v262 = vpop.f32.mrf.mxu0
    %v263 = vadd.f32 0.0, %v262
    %v264 = vpop.f32.mrf.mxu0
    %v265 = vadd.f32 0.0, %v264
    %266 = vmatmul.bf16.gmra.mxu0 %v178
    %v267 = vpop.f32.mrf.mxu0
    %v268 = vadd.f32 0.0, %v267
    %v269 = vpop.f32.mrf.mxu0
    %v270 = vadd.f32 0.0, %v269
    %271 = vmatmul.bf16.gmra.mxu0 %v179
    %v272 = vpop.f32.mrf.mxu0
    %v273 = vadd.f32 0.0, %v272
    %v274 = vpop.f32.mrf.mxu0
    %v275 = vadd.f32 0.0, %v274
    %276 = vmatmul.bf16.gmra.mxu0 %v180
    %v277 = vpop.f32.mrf.mxu0
    %v278 = vadd.f32 0.0, %v277
    %v279 = vpop.f32.mrf.mxu0
    %v280 = vadd.f32 0.0, %v279
    %281 = vmatmul.bf16.gmra.mxu0 %v181
    %v282 = vpop.f32.mrf.mxu0
    %v283 = vadd.f32 0.0, %v282
    %v284 = vpop.f32.mrf.mxu0
    %v285 = vadd.f32 0.0, %v284
    %286 = vdwg.mxu0
    %v287 = vadd.f32 %v94, %v248
    %v288 = vadd.f32 %v95, %v250
    %v289 = vadd.f32 %v96, %v253
    %v290 = vadd.f32 %v97, %v255
    %v291 = vadd.f32 %v98, %v258
    %v292 = vadd.f32 %v99, %v260
    %v293 = vadd.f32 %v100, %v263
    %v294 = vadd.f32 %v101, %v265
    %v295 = vadd.f32 %v102, %v268
    %v296 = vadd.f32 %v103, %v270
    %v297 = vadd.f32 %v104, %v273
    %v298 = vadd.f32 %v105, %v275
    %v299 = vadd.f32 %v106, %v278
    %v300 = vadd.f32 %v107, %v280
    %v301 = vadd.f32 %v108, %v283
    %v302 = vadd.f32 %v109, %v285
    %303 = vst [vmem:[#allocation2] sm:$0xff] %v287
    %304 = vst [vmem:[#allocation2 + $0x8] sm:$0xff] %v288
    %305 = vst [vmem:[#allocation2 + $0x10] sm:$0xff] %v289
    %306 = vst [vmem:[#allocation2 + $0x18] sm:$0xff] %v290
    %307 = vst [vmem:[#allocation2 + $0x20] sm:$0xff] %v291
    %308 = vst [vmem:[#allocation2 + $0x28] sm:$0xff] %v292
    %309 = vst [vmem:[#allocation2 + $0x30] sm:$0xff] %v293
    %310 = vst [vmem:[#allocation2 + $0x38] sm:$0xff] %v294
    %311 = vst [vmem:[#allocation2 + $0x40] sm:$0xff] %v295
    %312 = vst [vmem:[#allocation2 + $0x48] sm:$0xff] %v296
    %313 = vst [vmem:[#allocation2 + $0x50] sm:$0xff] %v297
    %314 = vst [vmem:[#allocation2 + $0x58] sm:$0xff] %v298
    %315 = vst [vmem:[#allocation2 + $0x60] sm:$0xff] %v299
    %316 = vst [vmem:[#allocation2 + $0x68] sm:$0xff] %v300
    %317 = vst [vmem:[#allocation2 + $0x70] sm:$0xff] %v301
    %318 = vst [vmem:[#allocation2 + $0x78] sm:$0xff] %v302
    // Predicated region
    $region46: #{tpu_custom_call.1} parent=1 // pred_check
      %p319 = pneg %p74
    $region47: #{tpu_custom_call.1} parent=1 // pred_check_branch
      %321 = sbr.rel (%p319) target = $region49
    $region48: #{tpu_custom_call.1} parent=1 // pred_region
      %v322 = vld [vmem:[#allocation2] sm:$0xff]
      %v323 = vld [vmem:[#allocation2 + $0x8] sm:$0xff]
      %v324 = vld [vmem:[#allocation2 + $0x10] sm:$0xff]
      %v325 = vld [vmem:[#allocation2 + $0x18] sm:$0xff]
      %v326 = vld [vmem:[#allocation2 + $0x20] sm:$0xff]
      %v327 = vld [vmem:[#allocation2 + $0x28] sm:$0xff]
      %v328 = vld [vmem:[#allocation2 + $0x30] sm:$0xff]
      %v329 = vld [vmem:[#allocation2 + $0x38] sm:$0xff]
      %v330 = vld [vmem:[#allocation2 + $0x40] sm:$0xff]
      %v331 = vld [vmem:[#allocation2 + $0x48] sm:$0xff]
      %v332 = vld [vmem:[#allocation2 + $0x50] sm:$0xff]
      %v333 = vld [vmem:[#allocation2 + $0x58] sm:$0xff]
      %v334 = vld [vmem:[#allocation2 + $0x60] sm:$0xff]
      %v335 = vld [vmem:[#allocation2 + $0x68] sm:$0xff]
      %v336 = vld [vmem:[#allocation2 + $0x70] sm:$0xff]
      %v337 = vld [vmem:[#allocation2 + $0x78] sm:$0xff]
      %v338 = vld [vmem:[%s1] sm:$0xff]
      %v339 = vld [vmem:[%s1 + $0x8] sm:$0xff]
      %v340 = vld [vmem:[%s1 + $0x10] sm:$0xff]
      %v341 = vld [vmem:[%s1 + $0x18] sm:$0xff]
      %v342 = vld [vmem:[%s1 + $0x20] sm:$0xff]
      %v343 = vld [vmem:[%s1 + $0x28] sm:$0xff]
      %v344 = vld [vmem:[%s1 + $0x30] sm:$0xff]
      %v345 = vld [vmem:[%s1 + $0x38] sm:$0xff]
      %v346 = vld [vmem:[%s1 + $0x40] sm:$0xff]
      %v347 = vld [vmem:[%s1 + $0x48] sm:$0xff]
      %v348 = vld [vmem:[%s1 + $0x50] sm:$0xff]
      %v349 = vld [vmem:[%s1 + $0x58] sm:$0xff]
      %v350 = vld [vmem:[%s1 + $0x60] sm:$0xff]
      %v351 = vld [vmem:[%s1 + $0x68] sm:$0xff]
      %v352 = vld [vmem:[%s1 + $0x70] sm:$0xff]
      %v353 = vld [vmem:[%s1 + $0x78] sm:$0xff]
      %355 = vset.pattern.permute.xlu0 0
      %356 = vperm.xlu0 %355, %v338
      %v357 = vpop.permute.xlu0 %356
      %360 = vset.pattern.permute.xlu0 0
      %361 = vperm.xlu0 %360, %v339
      %v362 = vpop.permute.xlu0 %361
      %365 = vset.pattern.permute.xlu0 0
      %366 = vperm.xlu0 %365, %v340
      %v367 = vpop.permute.xlu0 %366
      %370 = vset.pattern.permute.xlu0 0
      %371 = vperm.xlu0 %370, %v341
      %v372 = vpop.permute.xlu0 %371
      %375 = vset.pattern.permute.xlu0 0
      %376 = vperm.xlu0 %375, %v342
      %v377 = vpop.permute.xlu0 %376
      %380 = vset.pattern.permute.xlu0 0
      %381 = vperm.xlu0 %380, %v343
      %v382 = vpop.permute.xlu0 %381
      %385 = vset.pattern.permute.xlu0 0
      %386 = vperm.xlu0 %385, %v344
      %v387 = vpop.permute.xlu0 %386
      %390 = vset.pattern.permute.xlu0 0
      %391 = vperm.xlu0 %390, %v345
      %v392 = vpop.permute.xlu0 %391
      %395 = vset.pattern.permute.xlu0 0
      %396 = vperm.xlu0 %395, %v346
      %v397 = vpop.permute.xlu0 %396
      %400 = vset.pattern.permute.xlu0 0
      %401 = vperm.xlu0 %400, %v347
      %v402 = vpop.permute.xlu0 %401
      %405 = vset.pattern.permute.xlu0 0
      %406 = vperm.xlu0 %405, %v348
      %v407 = vpop.permute.xlu0 %406
      %410 = vset.pattern.permute.xlu0 0
      %411 = vperm.xlu0 %410, %v349
      %v412 = vpop.permute.xlu0 %411
      %415 = vset.pattern.permute.xlu0 0
      %416 = vperm.xlu0 %415, %v350
      %v417 = vpop.permute.xlu0 %416
      %420 = vset.pattern.permute.xlu0 0
      %421 = vperm.xlu0 %420, %v351
      %v422 = vpop.permute.xlu0 %421
      %425 = vset.pattern.permute.xlu0 0
      %426 = vperm.xlu0 %425, %v352
      %v427 = vpop.permute.xlu0 %426
      %430 = vset.pattern.permute.xlu0 0
      %431 = vperm.xlu0 %430, %v353
      %v432 = vpop.permute.xlu0 %431
      %v434 = vmul.f32 %v322, %v357
      %v435 = vmul.f32 %v323, %v362
      %v436 = vmul.f32 %v324, %v367
      %v437 = vmul.f32 %v325, %v372
      %v438 = vmul.f32 %v326, %v377
      %v439 = vmul.f32 %v327, %v382
      %v440 = vmul.f32 %v328, %v387
      %v441 = vmul.f32 %v329, %v392
      %v442 = vmul.f32 %v330, %v397
      %v443 = vmul.f32 %v331, %v402
      %v444 = vmul.f32 %v332, %v407
      %v445 = vmul.f32 %v333, %v412
      %v446 = vmul.f32 %v334, %v417
      %v447 = vmul.f32 %v335, %v422
      %v448 = vmul.f32 %v336, %v427
      %v449 = vmul.f32 %v337, %v432
      %v450 = vpack.c.bf16 %v435, %v434
      %v451 = vpack.c.bf16 %v437, %v436
      %v452 = vpack.c.bf16 %v439, %v438
      %v453 = vpack.c.bf16 %v441, %v440
      %v454 = vpack.c.bf16 %v443, %v442
      %v455 = vpack.c.bf16 %v445, %v444
      %v456 = vpack.c.bf16 %v447, %v446
      %v457 = vpack.c.bf16 %v449, %v448
      %v458 = vld [vmem:[#allocation6] sm:$0xf]
      %v459 = vld [vmem:[#allocation6 + $0x4] sm:$0xf]
      %v460 = vld [vmem:[#allocation6 + $0x8] sm:$0xf]
      %v461 = vld [vmem:[#allocation6 + $0xc] sm:$0xf]
      %v462 = vld [vmem:[#allocation6 + $0x10] sm:$0xf]
      %v463 = vld [vmem:[#allocation6 + $0x14] sm:$0xf]
      %v464 = vld [vmem:[#allocation6 + $0x18] sm:$0xf]
      %v465 = vld [vmem:[#allocation6 + $0x1c] sm:$0xf]
      %v466 = vld [vmem:[#allocation6 + $0x20] sm:$0xf]
      %v467 = vld [vmem:[#allocation6 + $0x24] sm:$0xf]
      %v468 = vld [vmem:[#allocation6 + $0x28] sm:$0xf]
      %v469 = vld [vmem:[#allocation6 + $0x2c] sm:$0xf]
      %v470 = vld [vmem:[#allocation6 + $0x30] sm:$0xf]
      %v471 = vld [vmem:[#allocation6 + $0x34] sm:$0xf]
      %v472 = vld [vmem:[#allocation6 + $0x38] sm:$0xf]
      %v473 = vld [vmem:[#allocation6 + $0x3c] sm:$0xf]
      %v474 = vld [vmem:[#allocation3] sm:$0xf]
      %v475 = vld [vmem:[#allocation3 + $0x4] sm:$0xf]
      %v476 = vld [vmem:[#allocation3 + $0x8] sm:$0xf]
      %v477 = vld [vmem:[#allocation3 + $0xc] sm:$0xf]
      %v478 = vld [vmem:[#allocation3 + $0x10] sm:$0xf]
      %v479 = vld [vmem:[#allocation3 + $0x14] sm:$0xf]
      %v480 = vld [vmem:[#allocation3 + $0x18] sm:$0xf]
      %v481 = vld [vmem:[#allocation3 + $0x1c] sm:$0xf]
      %v482 = vld [vmem:[#allocation3 + $0x20] sm:$0xf]
      %v483 = vld [vmem:[#allocation3 + $0x24] sm:$0xf]
      %v484 = vld [vmem:[#allocation3 + $0x28] sm:$0xf]
      %v485 = vld [vmem:[#allocation3 + $0x2c] sm:$0xf]
      %v486 = vld [vmem:[#allocation3 + $0x30] sm:$0xf]
      %v487 = vld [vmem:[#allocation3 + $0x34] sm:$0xf]
      %v488 = vld [vmem:[#allocation3 + $0x38] sm:$0xf]
      %v489 = vld [vmem:[#allocation3 + $0x3c] sm:$0xf]
      %v490 = vld [vmem:[#allocation8] sm:$0xf]
      %v491 = vld [vmem:[#allocation8 + $0x4] sm:$0xf]
      %v492 = vld [vmem:[#allocation8 + $0x8] sm:$0xf]
      %v493 = vld [vmem:[#allocation8 + $0xc] sm:$0xf]
      %v494 = vld [vmem:[#allocation8 + $0x10] sm:$0xf]
      %v495 = vld [vmem:[#allocation8 + $0x14] sm:$0xf]
      %v496 = vld [vmem:[#allocation8 + $0x18] sm:$0xf]
      %v497 = vld [vmem:[#allocation8 + $0x1c] sm:$0xf]
      %v498 = vld [vmem:[#allocation8 + $0x20] sm:$0xf]
      %v499 = vld [vmem:[#allocation8 + $0x24] sm:$0xf]
      %v500 = vld [vmem:[#allocation8 + $0x28] sm:$0xf]
      %v501 = vld [vmem:[#allocation8 + $0x2c] sm:$0xf]
      %v502 = vld [vmem:[#allocation8 + $0x30] sm:$0xf]
      %v503 = vld [vmem:[#allocation8 + $0x34] sm:$0xf]
      %v504 = vld [vmem:[#allocation8 + $0x38] sm:$0xf]
      %v505 = vld [vmem:[#allocation8 + $0x3c] sm:$0xf]
      %v522 = vunpack.c.l.b16 %v474
      %v523 = vunpack.c.l.b16 %v475
      %v524 = vunpack.c.l.b16 %v476
      %v525 = vunpack.c.l.b16 %v477
      %v526 = vunpack.c.l.b16 %v478
      %v527 = vunpack.c.l.b16 %v479
      %v528 = vunpack.c.l.b16 %v480
      %v529 = vunpack.c.l.b16 %v481
      %v530 = vunpack.c.l.b16 %v482
      %v531 = vunpack.c.l.b16 %v483
      %v532 = vunpack.c.l.b16 %v484
      %v533 = vunpack.c.l.b16 %v485
      %v534 = vunpack.c.l.b16 %v486
      %v535 = vunpack.c.l.b16 %v487
      %v536 = vunpack.c.l.b16 %v488
      %v537 = vunpack.c.l.b16 %v489
      %v538 = vpack.c.b16 %v523, %v522
      %v539 = vpack.c.b16 %v525, %v524
      %v540 = vpack.c.b16 %v527, %v526
      %v541 = vpack.c.b16 %v529, %v528
      %v542 = vpack.c.b16 %v531, %v530
      %v543 = vpack.c.b16 %v533, %v532
      %v544 = vpack.c.b16 %v535, %v534
      %v545 = vpack.c.b16 %v537, %v536
      %v570 = vunpack.c.l.b16 %v490
      %v571 = vunpack.c.l.b16 %v491
      %v572 = vunpack.c.l.b16 %v492
      %v573 = vunpack.c.l.b16 %v493
      %v574 = vunpack.c.l.b16 %v494
      %v575 = vunpack.c.l.b16 %v495
      %v576 = vunpack.c.l.b16 %v496
      %v577 = vunpack.c.l.b16 %v497
      %v578 = vunpack.c.l.b16 %v498
      %v579 = vunpack.c.l.b16 %v499
      %v580 = vunpack.c.l.b16 %v500
      %v581 = vunpack.c.l.b16 %v501
      %v582 = vunpack.c.l.b16 %v502
      %v583 = vunpack.c.l.b16 %v503
      %v584 = vunpack.c.l.b16 %v504
      %v585 = vunpack.c.l.b16 %v505
      %v586 = vpack.c.b16 %v571, %v570
      %v587 = vpack.c.b16 %v573, %v572
      %v588 = vpack.c.b16 %v575, %v574
      %v589 = vpack.c.b16 %v577, %v576
      %v590 = vpack.c.b16 %v579, %v578
      %v591 = vpack.c.b16 %v581, %v580
      %v592 = vpack.c.b16 %v583, %v582
      %v593 = vpack.c.b16 %v585, %v584
      %602 = vmatpush.bf16.msra.mxu0 %v593
      %603 = vmatpush.bf16.msra.mxu0 %v592
      %604 = vmatpush.bf16.msra.mxu0 %v591
      %605 = vmatpush.bf16.msra.mxu0 %v590
      %606 = vmatpush.bf16.msra.mxu0 %v589
      %607 = vmatpush.bf16.msra.mxu0 %v588
      %608 = vmatpush.bf16.msra.mxu0 %v587
      %609 = vmatpush.bf16.msra.mxu0 %v586
      %610 = vmatmul.bf16.gmra.mxu0 %v538
      %v611 = vpop.f32.mrf.mxu0
      %v612 = vadd.f32 0.0, %v611
      %v613 = vpop.f32.mrf.mxu0
      %v614 = vadd.f32 0.0, %v613
      %615 = vmatmul.bf16.gmra.mxu0 %v539
      %v616 = vpop.f32.mrf.mxu0
      %v617 = vadd.f32 0.0, %v616
      %v618 = vpop.f32.mrf.mxu0
      %v619 = vadd.f32 0.0, %v618
      %620 = vmatmul.bf16.gmra.mxu0 %v540
      %v621 = vpop.f32.mrf.mxu0
      %v622 = vadd.f32 0.0, %v621
      %v623 = vpop.f32.mrf.mxu0
      %v624 = vadd.f32 0.0, %v623
      %625 = vmatmul.bf16.gmra.mxu0 %v541
      %v626 = vpop.f32.mrf.mxu0
      %v627 = vadd.f32 0.0, %v626
      %v628 = vpop.f32.mrf.mxu0
      %v629 = vadd.f32 0.0, %v628
      %630 = vmatmul.bf16.gmra.mxu0 %v542
      %v631 = vpop.f32.mrf.mxu0
      %v632 = vadd.f32 0.0, %v631
      %v633 = vpop.f32.mrf.mxu0
      %v634 = vadd.f32 0.0, %v633
      %635 = vmatmul.bf16.gmra.mxu0 %v543
      %v636 = vpop.f32.mrf.mxu0
      %v637 = vadd.f32 0.0, %v636
      %v638 = vpop.f32.mrf.mxu0
      %v639 = vadd.f32 0.0, %v638
      %640 = vmatmul.bf16.gmra.mxu0 %v544
      %v641 = vpop.f32.mrf.mxu0
      %v642 = vadd.f32 0.0, %v641
      %v643 = vpop.f32.mrf.mxu0
      %v644 = vadd.f32 0.0, %v643
      %645 = vmatmul.bf16.gmra.mxu0 %v545
      %v646 = vpop.f32.mrf.mxu0
      %v647 = vadd.f32 0.0, %v646
      %v648 = vpop.f32.mrf.mxu0
      %v649 = vadd.f32 0.0, %v648
      %650 = vdwg.mxu0
      %v667 = vunpack.c.l.b16 %v458
      %v668 = vunpack.c.l.b16 %v459
      %v669 = vunpack.c.l.b16 %v460
      %v670 = vunpack.c.l.b16 %v461
      %v671 = vunpack.c.l.b16 %v462
      %v672 = vunpack.c.l.b16 %v463
      %v673 = vunpack.c.l.b16 %v464
      %v674 = vunpack.c.l.b16 %v465
      %v675 = vunpack.c.l.b16 %v466
      %v676 = vunpack.c.l.b16 %v467
      %v677 = vunpack.c.l.b16 %v468
      %v678 = vunpack.c.l.b16 %v469
      %v679 = vunpack.c.l.b16 %v470
      %v680 = vunpack.c.l.b16 %v471
      %v681 = vunpack.c.l.b16 %v472
      %v682 = vunpack.c.l.b16 %v473
      %v683 = vpack.c.b16 %v668, %v667
      %v684 = vpack.c.b16 %v670, %v669
      %v685 = vpack.c.b16 %v672, %v671
      %v686 = vpack.c.b16 %v674, %v673
      %v687 = vpack.c.b16 %v676, %v675
      %v688 = vpack.c.b16 %v678, %v677
      %v689 = vpack.c.b16 %v680, %v679
      %v690 = vpack.c.b16 %v682, %v681
      %699 = vmatpush.bf16.msra.mxu0 %v690
      %700 = vmatpush.bf16.msra.mxu0 %v689
      %701 = vmatpush.bf16.msra.mxu0 %v688
      %702 = vmatpush.bf16.msra.mxu0 %v687
      %703 = vmatpush.bf16.msra.mxu0 %v686
      %704 = vmatpush.bf16.msra.mxu0 %v685
      %705 = vmatpush.bf16.msra.mxu0 %v684
      %706 = vmatpush.bf16.msra.mxu0 %v683
      %707 = vmatmul.bf16.gmra.mxu0 %v450
      %v708 = vpop.f32.mrf.mxu0
      %v709 = vadd.f32 %v612, %v708
      %v710 = vpop.f32.mrf.mxu0
      %v711 = vadd.f32 %v614, %v710
      %712 = vmatmul.bf16.gmra.mxu0 %v451
      %v713 = vpop.f32.mrf.mxu0
      %v714 = vadd.f32 %v617, %v713
      %v715 = vpop.f32.mrf.mxu0
      %v716 = vadd.f32 %v619, %v715
      %717 = vmatmul.bf16.gmra.mxu0 %v452
      %v718 = vpop.f32.mrf.mxu0
      %v719 = vadd.f32 %v622, %v718
      %v720 = vpop.f32.mrf.mxu0
      %v721 = vadd.f32 %v624, %v720
      %722 = vmatmul.bf16.gmra.mxu0 %v453
      %v723 = vpop.f32.mrf.mxu0
      %v724 = vadd.f32 %v627, %v723
      %v725 = vpop.f32.mrf.mxu0
      %v726 = vadd.f32 %v629, %v725
      %727 = vmatmul.bf16.gmra.mxu0 %v454
      %v728 = vpop.f32.mrf.mxu0
      %v729 = vadd.f32 %v632, %v728
      %v730 = vpop.f32.mrf.mxu0
      %v731 = vadd.f32 %v634, %v730
      %732 = vmatmul.bf16.gmra.mxu0 %v455
      %v733 = vpop.f32.mrf.mxu0
      %v734 = vadd.f32 %v637, %v733
      %v735 = vpop.f32.mrf.mxu0
      %v736 = vadd.f32 %v639, %v735
      %737 = vmatmul.bf16.gmra.mxu0 %v456
      %v738 = vpop.f32.mrf.mxu0
      %v739 = vadd.f32 %v642, %v738
      %v740 = vpop.f32.mrf.mxu0
      %v741 = vadd.f32 %v644, %v740
      %742 = vmatmul.bf16.gmra.mxu0 %v457
      %v743 = vpop.f32.mrf.mxu0
      %v744 = vadd.f32 %v647, %v743
      %v745 = vpop.f32.mrf.mxu0
      %v746 = vadd.f32 %v649, %v745
      %747 = vdwg.mxu0
      %v748 = vld [vmem:[%s6] sm:$0x1]
      %v750 = vperm.slane %v748, 0
      %v752 = vadd.f32 %v709, %v750
      %v753 = vadd.f32 %v711, %v750
      %v754 = vadd.f32 %v714, %v750
      %v755 = vadd.f32 %v716, %v750
      %v756 = vadd.f32 %v719, %v750
      %v757 = vadd.f32 %v721, %v750
      %v758 = vadd.f32 %v724, %v750
      %v759 = vadd.f32 %v726, %v750
      %v760 = vadd.f32 %v729, %v750
      %v761 = vadd.f32 %v731, %v750
      %v762 = vadd.f32 %v734, %v750
      %v763 = vadd.f32 %v736, %v750
      %v764 = vadd.f32 %v739, %v750
      %v765 = vadd.f32 %v741, %v750
      %v766 = vadd.f32 %v744, %v750
      %v767 = vadd.f32 %v746, %v750
      %v768 = vmax.f32 %v752, 0.0
      %v769 = vmax.f32 %v753, 0.0
      %v770 = vmax.f32 %v754, 0.0
      %v771 = vmax.f32 %v755, 0.0
      %v772 = vmax.f32 %v756, 0.0
      %v773 = vmax.f32 %v757, 0.0
      %v774 = vmax.f32 %v758, 0.0
      %v775 = vmax.f32 %v759, 0.0
      %v776 = vmax.f32 %v760, 0.0
      %v777 = vmax.f32 %v761, 0.0
      %v778 = vmax.f32 %v762, 0.0
      %v779 = vmax.f32 %v763, 0.0
      %v780 = vmax.f32 %v764, 0.0
      %v781 = vmax.f32 %v765, 0.0
      %v782 = vmax.f32 %v766, 0.0
      %v783 = vmax.f32 %v767, 0.0
      %v784 = vpack.c.bf16 %v768, %v768
      %v785 = vpack.c.bf16 %v769, %v769
      %v786 = vpack.c.bf16 %v770, %v770
      %v787 = vpack.c.bf16 %v771, %v771
      %v788 = vpack.c.bf16 %v772, %v772
      %v789 = vpack.c.bf16 %v773, %v773
      %v790 = vpack.c.bf16 %v774, %v774
      %v791 = vpack.c.bf16 %v775, %v775
      %v792 = vpack.c.bf16 %v776, %v776
      %v793 = vpack.c.bf16 %v777, %v777
      %v794 = vpack.c.bf16 %v778, %v778
      %v795 = vpack.c.bf16 %v779, %v779
      %v796 = vpack.c.bf16 %v780, %v780
      %v797 = vpack.c.bf16 %v781, %v781
      %v798 = vpack.c.bf16 %v782, %v782
      %v799 = vpack.c.bf16 %v783, %v783
      %800 = vst [vmem:[#allocation9] sm:$0xf] %v784
      %801 = vst [vmem:[#allocation9 + $0x4] sm:$0xf] %v785
      %802 = vst [vmem:[#allocation9 + $0x8] sm:$0xf] %v786
      %803 = vst [vmem:[#allocation9 + $0xc] sm:$0xf] %v787
      %804 = vst [vmem:[#allocation9 + $0x10] sm:$0xf] %v788
      %805 = vst [vmem:[#allocation9 + $0x14] sm:$0xf] %v789
      %806 = vst [vmem:[#allocation9 + $0x18] sm:$0xf] %v790
      %807 = vst [vmem:[#allocation9 + $0x1c] sm:$0xf] %v791
      %808 = vst [vmem:[#allocation9 + $0x20] sm:$0xf] %v792
      %809 = vst [vmem:[#allocation9 + $0x24] sm:$0xf] %v793
      %810 = vst [vmem:[#allocation9 + $0x28] sm:$0xf] %v794
      %811 = vst [vmem:[#allocation9 + $0x2c] sm:$0xf] %v795
      %812 = vst [vmem:[#allocation9 + $0x30] sm:$0xf] %v796
      %813 = vst [vmem:[#allocation9 + $0x34] sm:$0xf] %v797
      %814 = vst [vmem:[#allocation9 + $0x38] sm:$0xf] %v798
      %815 = vst [vmem:[#allocation9 + $0x3c] sm:$0xf] %v799
    $region49: #{tpu_custom_call.1} parent=1 // pred_fallthru
      _
    // Predicated region
    $region50: #{tpu_custom_call.1} parent=1 // pred_check
      _
    $region51: #{tpu_custom_call.1} parent=1 // pred_check_branch
      %817 = sbr.rel (0) target = $region53
    $region52: #{tpu_custom_call.1} parent=1 // pred_region
      %819 = vsyncadd [#allocation5], 0
      %s820 = sshll.u32 [#allocation9], 4
      %s821 = int_to_ptr.vmem [resolvable:$true] %s820
      %s822 = sshll.u32 %s7, 4
      %s823 = int_to_ptr.hbm [resolvable:$true] %s822
      %828 = dma.vmem_to_hbm [thread:$0]  %s821, 1024, %s823, [#allocation5], 64, 64, 4
    $region53: #{tpu_custom_call.1} parent=1 // pred_fallthru
      _
    // Predicated region
    $region54: #{tpu_custom_call.1} parent=1 // pred_check
      _
    $region55: #{tpu_custom_call.1} parent=1 // pred_check_branch
      %830 = sbr.rel (0) target = $region57
    $region56: #{tpu_custom_call.1} parent=1 // pred_region
      %832 = dma.done [#allocation5], 1024
    $region57: #{tpu_custom_call.1} parent=1 // pred_fallthru
      _
    %833 = vsyncpa [#allocation4], 1
    %834 = vsyncpa [#allocation7], 1
    %835 = vsyncpa [#allocation5], 1

</llo_original>
